<compile_context>
chip_gen: v5e
topology: v5e:2x2
jax: 0.10.0
libtpu: 0.0.40
codegen_flags: <defaults>
</compile_context>

<pallas_src>
import math

import jax
import jax.numpy as jnp
from jax.experimental import pallas as pl
from jax.experimental.pallas import tpu as pltpu


# ----------------------------------------------------------------------------
# Pallas kernel: fused GaussianFourierProjection + Linear(time_dim -> c_z)
# ----------------------------------------------------------------------------
def _time_embed_kernel(t_ref, freq_ref, phase_ref, wT_ref, b_ref, out_ref):
    # [bb,1] * [1,TIME_DIM] + [1,TIME_DIM] -> [bb,TIME_DIM]; sin(x+pi/2)==cos(x)
    fourier = jnp.sin(t_ref[...] * freq_ref[...] + phase_ref[...])
    acc = jnp.dot(fourier, wT_ref[...],              # [bb, C_Z]  (MXU)
                  preferred_element_type=jnp.float32)
    out_ref[...] = acc + b_ref[...]                  # bias broadcast add


def _round_up(x, m):
    return ((x + m - 1) // m) * m


def time_pair_embedding(t, freq_row, phase_row, wT, bias_row):
    """t: [B] float. All other args pre-baked in MDFlowPallas.__init__ (f32):
       freq_row/phase_row: [1, TIME_DIM], wT: [TIME_DIM, C_Z], bias_row: [1, C_Z]."""
    B = t.shape[0]
    time_dim, c_z = wT.shape

    # Pad batch to a multiple of the block size so the (8,128) tiling rule holds
    # for any B; at B=8 this is a no-op.
    block_b = min(128, _round_up(B, 8))
    b_pad = _round_up(B, block_b)

    t2 = t.astype(jnp.float32).reshape(B, 1)
    if b_pad != B:
        t2 = jnp.pad(t2, ((0, b_pad - B), (0, 0)))

    out = pl.pallas_call(
        _time_embed_kernel,
        out_shape=jax.ShapeDtypeStruct((b_pad, c_z), jnp.float32),
        grid=(b_pad // block_b,),
        in_specs=[
            pl.BlockSpec((block_b, 1), lambda i: (i, 0)),
            pl.BlockSpec((1, time_dim), lambda i: (0, 0)),
            pl.BlockSpec((1, time_dim), lambda i: (0, 0)),
            pl.BlockSpec((time_dim, c_z), lambda i: (0, 0)),
            pl.BlockSpec((1, c_z), lambda i: (0, 0)),
        ],
        out_specs=pl.BlockSpec((block_b, c_z), lambda i: (i, 0)),
        compiler_params=pltpu.CompilerParams(
            dimension_semantics=("parallel",)),
    )(t2, freq_row, phase_row, wT, bias_row)

    if b_pad != B:
        out = out[:B]
    return out


# ----------------------------------------------------------------------------
# MDFlow wrapper (parameters initialized deterministically in-script)
# ----------------------------------------------------------------------------
class MDFlowPallas:
    def __init__(self, time_dim=32, c_z=128, seed=0):
        assert time_dim % 2 == 0
        self.time_dim = time_dim
        self.c_z = c_z
        half = time_dim // 2
        k_freq, k_w, k_b = jax.random.split(jax.random.PRNGKey(seed), 3)

        # GaussianFourierProjection: fixed random frequencies (scale=1.0).
        self.fourier_w = jax.random.normal(k_freq, (half,), jnp.float32)
        # OpenFold Linear(init='final') zero-inits weight & bias; small
        # deterministic random values here so the matmul path is exercised —
        # forward semantics (shapes/dtypes/ops) are identical.
        self.lin_w = 0.02 * jax.random.normal(k_w, (c_z, time_dim), jnp.float32)
        self.lin_b = 0.02 * jax.random.normal(k_b, (c_z,), jnp.float32)

        # ---- Pre-baked kernel layouts (hoisted out of the per-call path) ----
        # freq row pre-scaled by 2*pi and duplicated [w | w]; phase row turns
        # the second half's sin into cos.
        w2pi = 2.0 * math.pi * self.fourier_w
        self.freq_row = jnp.concatenate([w2pi, w2pi]).reshape(1, time_dim)
        self.phase_row = jnp.concatenate(
            [jnp.zeros((half,), jnp.float32),
             jnp.full((half,), 0.5 * math.pi, jnp.float32)]).reshape(1, time_dim)
        self.wT = jnp.transpose(self.lin_w)           # [TIME_DIM, C_Z]
        self.bias_row = self.lin_b.reshape(1, c_z)    # [1, C_Z]

    def forward(self, batch, prev_outputs=None):
        outputs = {}
        if 't' in batch:
            t_emb = time_pair_embedding(
                batch['t'], self.freq_row, self.phase_row, self.wT, self.bias_row)
            batch = dict(batch)
            batch['time_pair_emb'] = t_emb
            outputs['time_pair_emb'] = t_emb
        # TODO(synk): AlphaFold backbone forward (self.af_model(batch, prev_outputs))
        # is a full structure-prediction network with no clean single-kernel
        # Pallas equivalent; only the MDFlow-owned time-embedding is kerneled.
        return outputs


# ----------------------------------------------------------------------------
# Pure-JAX reference of the PyTorch semantics (for correctness check)
# ----------------------------------------------------------------------------
def _reference_time_emb(t, fourier_w, lin_w, lin_b):
    x_proj = t[:, None].astype(jnp.float32) * fourier_w[None, :] * 2.0 * math.pi
    fourier = jnp.concatenate([jnp.sin(x_proj), jnp.cos(x_proj)], axis=-1)
    return fourier @ lin_w.T + lin_b[None, :]


if __name__ == "__main__":
    TIME_DIM, C_Z = 32, 128
    model = MDFlowPallas(time_dim=TIME_DIM, c_z=C_Z, seed=0)

    key = jax.random.PRNGKey(0)

    # Case 1: aligned batch (B = 8), single grid step.
    B = 8
    t = jax.random.uniform(key, (B,), jnp.float32)   # diffusion times in [0, 1)
    out = model.forward({'t': t})
    t_emb = jax.block_until_ready(out['time_pair_emb'])
    ref = _reference_time_emb(t, model.fourier_w, model.lin_w, model.lin_b)
    assert t_emb.shape == (B, C_Z)
    assert jnp.allclose(t_emb, ref, atol=1e-5, rtol=1e-5), "mismatch vs reference (B=8)"

    # Case 2: odd batch (B = 5) — exercises the padding path / tiling safety.
    B2 = 5
    t2 = jax.random.uniform(jax.random.PRNGKey(1), (B2,), jnp.float32)
    out2 = model.forward({'t': t2})
    t_emb2 = jax.block_until_ready(out2['time_pair_emb'])
    ref2 = _reference_time_emb(t2, model.fourier_w, model.lin_w, model.lin_b)
    assert t_emb2.shape == (B2, C_Z)
    assert jnp.allclose(t_emb2, ref2, atol=1e-5, rtol=1e-5), "mismatch vs reference (B=5)"

    print("KERNEL_OK")
</pallas_src>

<mosaic_0001>
module attributes {stable_mosaic.version = 11 : i64} {
  func.func @_time_embed_kernel(%arg0: i32, %arg1: memref<8x1xf32, #tpu.memory_space<vmem>>, %arg2: memref<1x32xf32, #tpu.memory_space<vmem>>, %arg3: memref<1x32xf32, #tpu.memory_space<vmem>>, %arg4: memref<32x128xf32, #tpu.memory_space<vmem>>, %arg5: memref<1x128xf32, #tpu.memory_space<vmem>>, %arg6: memref<8x128xf32, #tpu.memory_space<vmem>>) attributes {dimension_semantics = [#tpu.dimension_semantics<parallel>], iteration_bounds = array<i64: 1>, scalar_prefetch = 0 : i64, scratch_operands = 0 : i64, tpu.core_type = #tpu.core_type<tc>, window_params = [{transform_indices = @transform_0, window_bounds = array<i64: 8, 1>}, {pipeline_mode = #tpu.pipeline_mode<synchronous>, transform_indices = @transform_1, window_bounds = array<i64: 1, 32>}, {pipeline_mode = #tpu.pipeline_mode<synchronous>, transform_indices = @transform_2, window_bounds = array<i64: 1, 32>}, {pipeline_mode = #tpu.pipeline_mode<synchronous>, transform_indices = @transform_3, window_bounds = array<i64: 32, 128>}, {pipeline_mode = #tpu.pipeline_mode<synchronous>, transform_indices = @transform_4, window_bounds = array<i64: 1, 128>}, {transform_indices = @transform_5, window_bounds = array<i64: 8, 128>}]} {
    %c0 = arith.constant 0 : index
    %c0_0 = arith.constant 0 : index
    %0 = vector.load %arg1[%c0, %c0_0] : memref<8x1xf32, #tpu.memory_space<vmem>>, vector<8x1xf32>
    %c0_1 = arith.constant 0 : index
    %c0_2 = arith.constant 0 : index
    %1 = vector.load %arg2[%c0_1, %c0_2] : memref<1x32xf32, #tpu.memory_space<vmem>>, vector<1x32xf32>
    %2 = vector.broadcast %0 : vector<8x1xf32> to vector<8x32xf32>
    %3 = vector.broadcast %1 : vector<1x32xf32> to vector<8x32xf32>
    %4 = arith.mulf %2, %3 : vector<8x32xf32>
    %c0_3 = arith.constant 0 : index
    %c0_4 = arith.constant 0 : index
    %5 = vector.load %arg3[%c0_3, %c0_4] : memref<1x32xf32, #tpu.memory_space<vmem>>, vector<1x32xf32>
    %6 = vector.broadcast %5 : vector<1x32xf32> to vector<8x32xf32>
    %7 = arith.addf %4, %6 : vector<8x32xf32>
    %8 = math.sin %7 : vector<8x32xf32>
    %c0_5 = arith.constant 0 : index
    %c0_6 = arith.constant 0 : index
    %9 = vector.load %arg4[%c0_5, %c0_6] : memref<32x128xf32, #tpu.memory_space<vmem>>, vector<32x128xf32>
    %cst = arith.constant dense<0.000000e+00> : vector<8x128xf32>
    %10 = tpu.matmul %8, %9, %cst {dimension_numbers = #tpu.dot_dimension_numbers<[1], [0], [0], [1], [0, 0, 1, 1], [], []>} : vector<8x32xf32>, vector<32x128xf32>, vector<8x128xf32> -> vector<8x128xf32>
    %c0_7 = arith.constant 0 : index
    %c0_8 = arith.constant 0 : index
    %11 = vector.load %arg5[%c0_7, %c0_8] : memref<1x128xf32, #tpu.memory_space<vmem>>, vector<1x128xf32>
    %12 = vector.broadcast %11 : vector<1x128xf32> to vector<8x128xf32>
    %13 = arith.addf %10, %12 : vector<8x128xf32>
    %c0_9 = arith.constant 0 : index
    %c0_10 = arith.constant 0 : index
    %14 = vector.load %arg6[%c0_9, %c0_10] : memref<8x128xf32, #tpu.memory_space<vmem>>, vector<8x128xf32>
    tpu.vector_store %arg6[%c0_9, %c0_10], %13 {strides = array<i32>} : memref<8x128xf32, #tpu.memory_space<vmem>>, vector<8x128xf32>,
    return
  }
  func.func @transform_0(%arg0: i32) -> (i32, i32) {
    %c0_i32 = arith.constant 0 : i32
    %c0_i32_0 = arith.constant 0 : i32
    return %arg0, %c0_i32 : i32, i32
  }
  func.func @transform_1(%arg0: i32) -> (i32, i32) {
    %c0_i32 = arith.constant 0 : i32
    %c0_i32_0 = arith.constant 0 : i32
    %c0_i32_1 = arith.constant 0 : i32
    return %c0_i32, %c0_i32_0 : i32, i32
  }
  func.func @transform_2(%arg0: i32) -> (i32, i32) {
    %c0_i32 = arith.constant 0 : i32
    %c0_i32_0 = arith.constant 0 : i32
    %c0_i32_1 = arith.constant 0 : i32
    return %c0_i32, %c0_i32_0 : i32, i32
  }
  func.func @transform_3(%arg0: i32) -> (i32, i32) {
    %c0_i32 = arith.constant 0 : i32
    %c0_i32_0 = arith.constant 0 : i32
    %c0_i32_1 = arith.constant 0 : i32
    return %c0_i32, %c0_i32_0 : i32, i32
  }
  func.func @transform_4(%arg0: i32) -> (i32, i32) {
    %c0_i32 = arith.constant 0 : i32
    %c0_i32_0 = arith.constant 0 : i32
    %c0_i32_1 = arith.constant 0 : i32
    return %c0_i32, %c0_i32_0 : i32, i32
  }
  func.func @transform_5(%arg0: i32) -> (i32, i32) {
    %c0_i32 = arith.constant 0 : i32
    %c0_i32_0 = arith.constant 0 : i32
    return %arg0, %c0_i32 : i32, i32
  }
}

</mosaic_0001>

<llo_original>
// kernel: tpu_custom_call.1
$region0: #{tpu_custom_call.1}
  #allocation0 [shape = 'u32[]', space=smem, size = 0x4, offset = 0x4, fixed_abs, tag = 'smem constant byte address 0x4 - core index']
  #allocation1 [shape = 'u32[72,128]{1,0:T(1,128)}', space=vmem, size = 0x9000, scoped, tag = 'internal scratch']
  %s0 = inlined_call_operand.vmem [shape: f32[8,1], index: 0, kind: input, shape index: {}]
  %s1 = inlined_call_operand.vmem [shape: f32[1,32], index: 1, kind: input, shape index: {}]
  %s2 = inlined_call_operand.vmem [shape: f32[1,32], index: 2, kind: input, shape index: {}]
  %s3 = inlined_call_operand.hbm [shape: f32[32,128], index: 3, kind: input, shape index: {}]
  %s4 = inlined_call_operand.vmem [shape: f32[1,128], index: 4, kind: input, shape index: {}]
  %s5 = inlined_call_operand.hbm [shape: f32[8,128], index: 5, kind: output, shape index: {}]
  %s6 = sld [smem:[#allocation0]]
  $region34: #{tpu_custom_call.1} parent=0
    _
  %s8 = ssub.s32 1, %s6
  %s9 = scalar_select 0, %s8, %s6
  $region1: #{tpu_custom_call.1} parent=0
    #allocation2 [shape = 'u8[16384]{0}', space=vmem, size = 0x4000, scoped, tag = 'input window, operand 3, single buffered']
    #allocation3 [shape = 's32[1]{0}', space=sflag, size = 0x4, scoped, tag = 'scoped memory for tpu_custom_call.1']
    #allocation4 [shape = 's32[1]{0}', space=sflag, size = 0x4, scoped, tag = 'scoped memory for tpu_custom_call.1']
    #allocation5 [shape = 'u8[4096]{0}', space=vmem, size = 0x1000, scoped, tag = 'output window, operand 0, single buffered']
    %10 = vsyncpa [#allocation3], 0
    %11 = vsyncpa [#allocation4], 0
    // Predicated region
    $region2: #{tpu_custom_call.1} parent=1 // pred_check
      _
    $region3: #{tpu_custom_call.1} parent=1 // pred_check_branch
      %13 = sbr.rel (0) target = $region5
    $region4: #{tpu_custom_call.1} parent=1 // pred_region
      _
    $region5: #{tpu_custom_call.1} parent=1 // pred_fallthru
      _
    // Predicated region
    $region6: #{tpu_custom_call.1} parent=1 // pred_check
      _
    $region7: #{tpu_custom_call.1} parent=1 // pred_check_branch
      %15 = sbr.rel (0) target = $region9
    $region8: #{tpu_custom_call.1} parent=1 // pred_region
      _
    $region9: #{tpu_custom_call.1} parent=1 // pred_fallthru
      _
    // Predicated region
    $region10: #{tpu_custom_call.1} parent=1 // pred_check
      _
    $region11: #{tpu_custom_call.1} parent=1 // pred_check_branch
      %17 = sbr.rel (0) target = $region13
    $region12: #{tpu_custom_call.1} parent=1 // pred_region
      _
    $region13: #{tpu_custom_call.1} parent=1 // pred_fallthru
      _
    // Predicated region
    $region14: #{tpu_custom_call.1} parent=1 // pred_check
      _
    $region15: #{tpu_custom_call.1} parent=1 // pred_check_branch
      %19 = sbr.rel (0) target = $region17
    $region16: #{tpu_custom_call.1} parent=1 // pred_region
      %21 = vsyncadd [#allocation3], 0
      %s22 = sshll.u32 %s3, 4
      %s23 = int_to_ptr.hbm [resolvable:$true] %s22
      %s24 = sshll.u32 [#allocation2], 4
      %s25 = int_to_ptr.vmem [resolvable:$true] %s24
      %30 = dma.hbm_to_vmem [thread:$0]  %s23, 512, %s25, [#allocation3], 128, 128, 8
    $region17: #{tpu_custom_call.1} parent=1 // pred_fallthru
      _
    // Predicated region
    $region18: #{tpu_custom_call.1} parent=1 // pred_check
      _
    $region19: #{tpu_custom_call.1} parent=1 // pred_check_branch
      %32 = sbr.rel (0) target = $region21
    $region20: #{tpu_custom_call.1} parent=1 // pred_region
      _
    $region21: #{tpu_custom_call.1} parent=1 // pred_fallthru
      _
    // Predicated region
    $region22: #{tpu_custom_call.1} parent=1 // pred_check
      _
    $region23: #{tpu_custom_call.1} parent=1 // pred_check_branch
      %34 = sbr.rel (0) target = $region25
    $region24: #{tpu_custom_call.1} parent=1 // pred_region
      %36 = dma.done [#allocation3], 512
    $region25: #{tpu_custom_call.1} parent=1 // pred_fallthru
      _
    %v37 = vld [vmem:[%s0] sm:$0xff]
    %v38 = vld [vmem:[%s1] sm:$0x1]
    %40 = vset.pattern.permute.xlu0 0
    %41 = vperm.xlu0 %40, %v37
    %v42 = vpop.permute.xlu0 %41
    %v45 = vperm.slane %v38, 0
    %v47 = vmul.f32 %v42, %v45
    %v48 = vld [vmem:[%s2] sm:$0x1]
    %v50 = vperm.slane %v48, 0
    %v52 = vadd.f32 %v47, %v50
    %v53 = vand.u32 2147483647, %v52
    %vm54 = vcmp.le.f32.partialorder %v53, 0.7853982
    %vm55 = vcmp.lt.s32.totalorder %v52, 0
    %v56 = vand.u32 %v52, 2139095040
    %v57 = vshrl.u32 %v56, 23
    %v58 = vsub.s32 %v57, 127
    %v59 = vand.u32 2147483647, %v52
    %v60 = vand.u32 %v59, 8388607
    %v61 = vor.u32 %v60, 8388608
    %v62 = vsub.s32 0, %v61
    %v63 = vadd.s32 %v58, 1
    %vm64 = vcmp.gt.s32.totalorder %v63, 0
    %v65 = vsel %vm64, %v63, 0
    %v66 = vshrl.u32 %v65, 5
    %v67 = vand.u32 %v65, 31
    %v68 = vsub.s32 32, %v67
    %v69 = vshrl.u32 683565275, %v68
    %v70 = vshll.u32 683565275, %v67
    %v71 = vshrl.u32 2475754826, %v68
    %v72 = vor.u32 %v70, %v71
    %v73 = vshll.u32 2475754826, %v67
    %v74 = vshrl.u32 2131351028, %v68
    %v75 = vor.u32 %v73, %v74
    %v76 = vshll.u32 2131351028, %v67
    %v77 = vshrl.u32 2102212464, %v68
    %v78 = vor.u32 %v76, %v77
    %v79 = vshll.u32 2102212464, %v67
    %v80 = vshrl.u32 920167782, %v68
    %v81 = vor.u32 %v79, %v80
    %v82 = vshll.u32 920167782, %v67
    %v83 = vshrl.u32 1326507024, %v68
    %v84 = vor.u32 %v82, %v83
    %vm85 = vcmp.lt.s32.totalorder %v66, 1
    %vm86 = vcmp.lt.s32.totalorder %v66, 2
    %vm87 = vcmp.lt.s32.totalorder %v66, 3
    %vm88 = vcmp.lt.s32.totalorder %v66, 4
    %v89 = vsel %vm85, %v69, %v72
    %v90 = vsel %vm88, %v78, 2102212464
    %v91 = vsel %vm87, %v75, %v90
    %v92 = vsel %vm86, %v89, %v91
    %v93 = vsel %vm85, %v72, %v75
    %v94 = vsel %vm88, %v81, 920167782
    %v95 = vsel %vm87, %v78, %v94
    %v96 = vsel %vm86, %v93, %v95
    %v97 = vsel %vm85, %v75, %v78
    %v98 = vsel %vm88, %v84, 1326507024
    %v99 = vsel %vm87, %v81, %v98
    %v100 = vsel %vm86, %v97, %v99
    %v101 = vshll.u32 %v61, 8
    %v102 = vand.u32 %v101, 65535
    %v103 = vshrl.u32 %v101, 16
    %v104 = vand.u32 %v100, 65535
    %v105 = vshrl.u32 %v100, 16
    %v106 = vmul.u32 %v102, %v104
    %v107 = vmul.u32 %v102, %v105
    %v108 = vmul.u32 %v103, %v104
    %v109 = vmul.u32 %v103, %v105
    %v110 = vshll.u32 %v107, 16
    %v111 = vshrl.u32 %v107, 16
    %v112 = vshll.u32 %v108, 16
    %v113 = vshrl.u32 %v108, 16
    %vm114 = vc.u32 %v106, %v110
    %v115 = vsel %vm114, 1, 0
    %v116 = vadd.s32 %v106, %v110
    %v117 = vadd.s32 %v109, %v115
    %vm118 = vc.u32 %v116, %v112
    %v119 = vsel %vm118, 1, 0
    %v120 = vadd.s32 %v116, %v112
    %v121 = vadd.s32 %v117, %v119
    %v122 = vadd.s32 %v121, %v111
    %v123 = vadd.s32 %v122, %v113
    %v124 = vand.u32 %v101, 65535
    %v125 = vshrl.u32 %v101, 16
    %v126 = vand.u32 %v96, 65535
    %v127 = vshrl.u32 %v96, 16
    %v128 = vmul.u32 %v124, %v126
    %v129 = vmul.u32 %v124, %v127
    %v130 = vmul.u32 %v125, %v126
    %v131 = vmul.u32 %v125, %v127
    %v132 = vshll.u32 %v129, 16
    %v133 = vshrl.u32 %v129, 16
    %v134 = vshll.u32 %v130, 16
    %v135 = vshrl.u32 %v130, 16
    %vm136 = vc.u32 %v128, %v132
    %v137 = vsel %vm136, 1, 0
    %v138 = vadd.s32 %v128, %v132
    %v139 = vadd.s32 %v131, %v137
    %vm140 = vc.u32 %v138, %v134
    %v141 = vsel %vm140, 1, 0
    %v142 = vadd.s32 %v138, %v134
    %v143 = vadd.s32 %v139, %v141
    %v144 = vadd.s32 %v143, %v133
    %v145 = vadd.s32 %v144, %v135
    %v146 = vmul.u32 %v101, %v92
    %v147 = vadd.s32 %v123, %v142
    %vm148 = vc.u32 %v123, %v142
    %v149 = vadd.s32 %v145, 1
    %v150 = vsel %vm148, %v149, %v145
    %v151 = vadd.s32 %v146, %v150
    %v152 = vadd.s32 %v151, 536870912
    %v153 = vshrl.u32 %v152, 30
    %v154 = vshll.u32 %v153, 30
    %v155 = vsub.s32 %v151, %v154
    %vm156 = vcmp.lt.s32.totalorder %v155, 0
    %v157 = vsub.s32 0, %v155
    %v158 = vsel %vm156, %v157, %v155
    %v159 = vclz %v158
    %v160 = vsub.s32 %v159, 2
    %vm161 = vcmp.gt.s32.totalorder 0, %v160
    %v162 = vsel %vm161, 0, %v160
    %v163 = vsub.s32 32, %v162
    %v164 = vshll.u32 %v155, %v162
    %v165 = vshrl.u32 %v147, %v163
    %v166 = vor.u32 %v164, %v165
    %v167 = vsub.s32 4294967266, %v162
    %v168 = vadd.s32 %v167, 127
    %v169 = vshll.u32 %v168, 23
    %v170 = vor.u32 4788187, %v169
    %v171 = vand.u32 2147483647, %v170
    %v173 = vcvt.s32.f32 %v166
    %v174 = vmul.f32 %v173, %v171
    %v175 = vxor.u32 %v174, 2147483648
    %v176 = vsel %vm55, %v175, %v174
    %v177 = vsub.s32 4, %v153
    %v178 = vsel %vm55, %v177, %v153
    %v179 = vsel %vm54, %v52, %v176
    %v180 = vsel %vm54, 0, %v178
    %v181 = vmul.f32 %v179, %v179
    %v182 = vmul.f32 %v181, -0.001358992
    %v183 = vadd.f32 %v182, 0.041655596
    %v184 = vmul.f32 %v181, %v183
    %v185 = vadd.f32 %v184, -0.4999988
    %v186 = vmul.f32 %v181, %v185
    %v187 = vadd.f32 1.0, %v186
    %v188 = vmul.f32 %v179, %v179
    %v189 = vmul.f32 %v188, -0.00019511016
    %v190 = vadd.f32 %v189, 0.008332121
    %v191 = vmul.f32 %v188, %v190
    %v192 = vadd.f32 %v191, -0.16666654
    %v193 = vmul.f32 %v188, %v192
    %v194 = vadd.f32 %v193, 1.0
    %v195 = vmul.f32 %v194, %v179
    %vm196 = vweird.f32 %v52
    %v197 = vadd.s32 %v180, 3
    %v198 = vand.u32 %v197, 3
    %vm199 = vcmp.lt.s32.totalorder %v198, 2
    %vm200 = vcmp.eq.s32.totalorder %v198, 0
    %v201 = vxor.u32 %v195, 2147483648
    %v202 = vsel %vm200, %v187, %v201
    %vm203 = vcmp.eq.s32.totalorder %v198, 2
    %v204 = vxor.u32 %v187, 2147483648
    %v205 = vsel %vm203, %v204, %v195
    %v206 = vsel %vm199, %v202, %v205
    %v207 = vsel %vm196, nan, %v206
    %v208 = vld [vmem:[#allocation2] sm:$0xff]
    %v209 = vld [vmem:[#allocation2 + $0x8] sm:$0xff]
    %v210 = vld [vmem:[#allocation2 + $0x10] sm:$0xff]
    %v211 = vld [vmem:[#allocation2 + $0x18] sm:$0xff]
    %v212 = vld [vmem:[%s4] sm:$0x1]
    %v214 = vperm.slane %v212, 0
    %vm216 = vcmask 261120
    %v218 = vsel %vm216, %v207, 0
    %220 = vmatpush.msra.mxu0 0.0
    %221 = vmatpush.msra.mxu0 0.0
    %222 = vmatpush.msra.mxu0 0.0
    %223 = vmatpush.msra.mxu0 0.0
    %224 = vmatpush.msra.mxu0 0.0
    %225 = vmatpush.msra.mxu0 0.0
    %226 = vmatpush.msra.mxu0 0.0
    %227 = vmatpush.msra.mxu0 0.0
    %228 = vmatpush.msra.mxu0 0.0
    %229 = vmatpush.msra.mxu0 0.0
    %230 = vmatpush.msra.mxu0 0.0
    %231 = vmatpush.msra.mxu0 0.0
    %232 = vmatpush.msra.mxu0 %v211
    %233 = vmatpush.msra.mxu0 %v210
    %234 = vmatpush.msra.mxu0 %v209
    %235 = vmatpush.msra.mxu0 %v208
    %236 = vmatmul.f32.gmra.mxu0 %v218
    %v237 = vpop.f32.mrf.mxu0
    %v238 = vadd.f32 %v214, %v237
    %239 = vdwg.mxu0
    %240 = vst [vmem:[#allocation5] sm:$0xff] %v238
    // Predicated region
    $region26: #{tpu_custom_call.1} parent=1 // pred_check
      _
    $region27: #{tpu_custom_call.1} parent=1 // pred_check_branch
      %242 = sbr.rel (0) target = $region29
    $region28: #{tpu_custom_call.1} parent=1 // pred_region
      %244 = vsyncadd [#allocation4], 0
      %s246 = sshll.u32 [#allocation5], 4
      %s247 = int_to_ptr.vmem [resolvable:$true] %s246
      %s248 = sshll.u32 %s5, 4
      %s249 = int_to_ptr.hbm [resolvable:$true] %s248
      %251 = dma.vmem_to_hbm [thread:$0]  %s247, 128, %s249, [#allocation4]
    $region29: #{tpu_custom_call.1} parent=1 // pred_fallthru
      _
    // Predicated region
    $region30: #{tpu_custom_call.1} parent=1 // pred_check
      _
    $region31: #{tpu_custom_call.1} parent=1 // pred_check_branch
      %253 = sbr.rel (0) target = $region33
    $region32: #{tpu_custom_call.1} parent=1 // pred_region
      %255 = dma.done [#allocation4], 128
    $region33: #{tpu_custom_call.1} parent=1 // pred_fallthru
      _
    %256 = vsyncpa [#allocation3], 1
    %257 = vsyncpa [#allocation4], 1

</llo_original>
